<compile_context>
chip_gen: v5e
topology: v5e:2x2
jax: 0.10.0
libtpu: 0.0.40
codegen_flags: <defaults>
</compile_context>

<pallas_src>
import functools

import jax
import jax.numpy as jnp
from jax.experimental import pallas as pl
from jax.experimental.pallas import tpu as pltpu


NUM_CORE_SPLIT = 2    # leading "parallel" grid axis: both TCs on v7x, two
                      # cheap sequential steps on v5e/v6e.
CHUNKS_PER_CORE = 4   # outstanding DMAs per core for the bulk shift.


def _chunk_bounds(total, nchunks, align=8):
    """Static partition of [0, total) into nchunks contiguous spans.

    Interior boundaries are rounded down to `align` rows so that (with a batch
    that is a multiple of 8) every DMA destination row offset stays
    (8,128)-tile aligned.  Spans may be empty for tiny `total`; the caller
    drops empties at trace time.
    """
    bounds = [0]
    for i in range(1, nchunks):
        b = ((total * i) // nchunks // align) * align
        bounds.append(max(b, bounds[-1]))
    bounds.append(total)
    return bounds


def _fifo_shift_kernel(new_ref, old_ref, out_ref, sems, *, batch,
                       num_cores, chunks_per_core):
    """DMA-only FIFO shift of the embedding bank.

        out[0:batch, :]  = new[:, :]            (freshly pushed rows)
        out[batch:M, :]  = old[0:M-batch, :]    (shifted old bank, read once)

    new/old/out all stay in HBM (memory_space=pl.ANY).  Every copy is an
    HBM->HBM DMA; within a grid program all copies are started before any is
    waited on, so they overlap and keep several DMAs outstanding.
    """
    M = out_ref.shape[0]
    keep = M - batch
    core = pl.program_id(0)

    nchunks = num_cores * chunks_per_core
    bounds = _chunk_bounds(keep, nchunks, align=8)

    for c in range(num_cores):
        # Chunks owned by grid program / core `c` (static at trace time).
        spans = []
        for j in range(chunks_per_core):
            k = c * chunks_per_core + j
            lo, hi = bounds[k], bounds[k + 1]
            if hi > lo:
                spans.append((k, lo, hi))

        if not spans and c != 0:
            continue  # nothing to do for this core (tiny banks only)

        @pl.when(core == c)
        def _(c=c, spans=spans):
            copies = []
            # Bulk shift of the surviving old rows, in several chunks so that
            # multiple DMAs are in flight simultaneously.
            for (k, lo, hi) in spans:
                copies.append(pltpu.make_async_copy(
                    old_ref.at[pl.ds(lo, hi - lo), :],
                    out_ref.at[pl.ds(batch + lo, hi - lo), :],
                    sems.at[k],
                ))
            # Tiny head copy (the freshly pushed embeddings) from core 0.
            if c == 0:
                copies.append(pltpu.make_async_copy(
                    new_ref,
                    out_ref.at[pl.ds(0, batch), :],
                    sems.at[nchunks],
                ))
            # Issue everything, then wait on everything (disjoint dest rows,
            # read-only sources -> no ordering hazards).
            for cp in copies:
                cp.start()
            for cp in copies:
                cp.wait()


def memory_bank_fetch(embeds_ema, labels, embed_bank, label_bank,
                      *, num_cores=NUM_CORE_SPLIT,
                      chunks_per_core=CHUNKS_PER_CORE):
    """Pallas implementation of MemoryBank.fetch()."""
    B, D = embeds_ema.shape
    M, D2 = embed_bank.shape
    assert D == D2, "feature dim mismatch"
    assert B < M, "batch must be smaller than the memory size"
    # Perf note: B a multiple of 8 keeps every DMA destination offset
    # (8,128)-tile aligned (correctness holds for any B, just slower).
    # Perf note: D a multiple of 128 avoids lane-padding traffic in the
    # (8,128)-tiled HBM layout (at D=32 the shift moves up to 4x the logical
    # bytes); this is a property of the caller's array layout, not the kernel.

    new_emb = embeds_ema.astype(embed_bank.dtype)
    nchunks = num_cores * chunks_per_core

    out_emb = pl.pallas_call(
        functools.partial(_fifo_shift_kernel, batch=B,
                          num_cores=num_cores,
                          chunks_per_core=chunks_per_core),
        out_shape=jax.ShapeDtypeStruct((M, D), embed_bank.dtype),
        grid=(num_cores,),
        in_specs=[
            pl.BlockSpec(memory_space=pl.ANY),   # embeds_ema     (stays in HBM)
            pl.BlockSpec(memory_space=pl.ANY),   # old embed bank (stays in HBM)
        ],
        out_specs=pl.BlockSpec(memory_space=pl.ANY),
        scratch_shapes=[pltpu.SemaphoreType.DMA((nchunks + 1,))],
        compiler_params=pltpu.CompilerParams(
            dimension_semantics=("parallel",)),
    )(new_emb, embed_bank)

    # Label FIFO shift: M*4 bytes total (<= 256 KiB at M=65536).  Kept as a
    # fused XLA concat+slice inside the same jit (review: folding it into the
    # kernel saves only one ~2-5 us dispatch).
    out_lab = jnp.concatenate([labels.astype(label_bank.dtype), label_bank])[:M]

    return out_emb, out_lab


_memory_bank_fetch_jit = jax.jit(memory_bank_fetch)


class MemoryBank:
    """JAX/Pallas port of the PyTorch MemoryBank module."""

    def __init__(self, input_dim, memory_size, key):
        k_emb, k_lab = jax.random.split(key)
        self.memory_size = memory_size
        # torch.randn(memory_size, input_dim)
        self.embed_bank = jax.random.normal(
            k_emb, (memory_size, input_dim), dtype=jnp.float32)
        # torch.randint(0, 20, (memory_size,))
        self.label_bank = jax.random.randint(
            k_lab, (memory_size,), 0, 20, dtype=jnp.int32)

    def fetch(self, embeds_ema, labels):
        self.embed_bank, self.label_bank = _memory_bank_fetch_jit(
            embeds_ema, labels, self.embed_bank, self.label_bank)
        return self.embed_bank, self.label_bank

    def forward(self):
        # The PyTorch module's forward() has no compute and returns None.
        return None

    __call__ = forward


if __name__ == "__main__":
    key = jax.random.PRNGKey(0)
    k_bank, k_emb, k_lab = jax.random.split(key, 3)

    # Small, shape-consistent example: memory_size=1024 (stand-in for 65536),
    # input_dim=32, batch of 8 new embeddings.
    MEMORY_SIZE = 1024
    INPUT_DIM = 32
    BATCH = 8

    bank = MemoryBank(INPUT_DIM, MEMORY_SIZE, k_bank)
    old_embed_bank = bank.embed_bank
    old_label_bank = bank.label_bank

    embeds_ema = jax.random.normal(k_emb, (BATCH, INPUT_DIM), dtype=jnp.float32)
    labels = jax.random.randint(k_lab, (BATCH,), 0, 20, dtype=jnp.int32)

    new_emb, new_lab = bank.fetch(embeds_ema, labels)
    new_emb = jax.block_until_ready(new_emb)
    new_lab = jax.block_until_ready(new_lab)

    # Reference (plain JAX) check of fetch() semantics.
    ref_emb = jnp.concatenate([embeds_ema, old_embed_bank])[:MEMORY_SIZE, :]
    ref_lab = jnp.concatenate([labels, old_label_bank])[:MEMORY_SIZE]
    assert new_emb.shape == (MEMORY_SIZE, INPUT_DIM)
    assert new_lab.shape == (MEMORY_SIZE,)
    assert jnp.allclose(new_emb, ref_emb)
    assert jnp.array_equal(new_lab, ref_lab)

    # forward() is a no-op returning None, as in the PyTorch module.
    assert bank.forward() is None

    print("KERNEL_OK")
</pallas_src>

<mosaic_0001>
module attributes {stable_mosaic.version = 11 : i64} {
  func.func @_fifo_shift_kernel(%arg0: i32, %arg1: memref<8x32xf32, #tpu.memory_space<any>>, %arg2: memref<1024x32xf32, #tpu.memory_space<any>>, %arg3: memref<1024x32xf32, #tpu.memory_space<any>>, %arg4: memref<9x!tpu.dma_semaphore, #tpu.memory_space<semaphore_mem>>) attributes {dimension_semantics = [#tpu.dimension_semantics<parallel>], iteration_bounds = array<i64: 2>, scalar_prefetch = 0 : i64, scratch_operands = 1 : i64, tpu.core_type = #tpu.core_type<tc>, window_params = [{}, {}, {}]} {
    %c0_i32 = arith.constant 0 : i32
    %0 = arith.cmpi eq, %arg0, %c0_i32 : i32
    %1 = arith.extui %0 : i1 to i32
    %c0_i32_0 = arith.constant 0 : i32
    %2 = arith.cmpi ne, %1, %c0_i32_0 : i32
    scf.if %2 {
      %c0_i32_2 = arith.constant 0 : i32
      %c0_i32_3 = arith.constant 0 : i32
      %c0_i32_4 = arith.constant 0 : i32
      %6 = tpu.memref_slice %arg2[%c0_i32_3, %c0_i32_4] : memref<1024x32xf32, #tpu.memory_space<any>> -> memref<120x32xf32, #tpu.memory_space<any>>
      %c8_i32 = arith.constant 8 : i32
      %c0_i32_5 = arith.constant 0 : i32
      %7 = tpu.memref_slice %arg3[%c8_i32, %c0_i32_5] : memref<1024x32xf32, #tpu.memory_space<any>> -> memref<120x32xf32, #tpu.memory_space<any>>
      %8 = tpu.memref_slice %arg4[%c0_i32_2] : memref<9x!tpu.dma_semaphore, #tpu.memory_space<semaphore_mem>> -> memref<1x!tpu.dma_semaphore, #tpu.memory_space<semaphore_mem>>
      %9 = tpu.memref_squeeze %8 : memref<1x!tpu.dma_semaphore, #tpu.memory_space<semaphore_mem>> -> memref<!tpu.dma_semaphore, #tpu.memory_space<semaphore_mem>>
      tpu.enqueue_dma source(%6 : memref<120x32xf32, #tpu.memory_space<any>>) target(%7 : memref<120x32xf32, #tpu.memory_space<any>>) target_semaphore(%9 : memref<!tpu.dma_semaphore, #tpu.memory_space<semaphore_mem>>)
      %c1_i32_6 = arith.constant 1 : i32
      %c120_i32 = arith.constant 120 : i32
      %c0_i32_7 = arith.constant 0 : i32
      %10 = tpu.memref_slice %arg2[%c120_i32, %c0_i32_7] : memref<1024x32xf32, #tpu.memory_space<any>> -> memref<128x32xf32, #tpu.memory_space<any>>
      %c128_i32 = arith.constant 128 : i32
      %c0_i32_8 = arith.constant 0 : i32
      %11 = tpu.memref_slice %arg3[%c128_i32, %c0_i32_8] : memref<1024x32xf32, #tpu.memory_space<any>> -> memref<128x32xf32, #tpu.memory_space<any>>
      %12 = tpu.memref_slice %arg4[%c1_i32_6] : memref<9x!tpu.dma_semaphore, #tpu.memory_space<semaphore_mem>> -> memref<1x!tpu.dma_semaphore, #tpu.memory_space<semaphore_mem>>
      %13 = tpu.memref_squeeze %12 : memref<1x!tpu.dma_semaphore, #tpu.memory_space<semaphore_mem>> -> memref<!tpu.dma_semaphore, #tpu.memory_space<semaphore_mem>>
      tpu.enqueue_dma source(%10 : memref<128x32xf32, #tpu.memory_space<any>>) target(%11 : memref<128x32xf32, #tpu.memory_space<any>>) target_semaphore(%13 : memref<!tpu.dma_semaphore, #tpu.memory_space<semaphore_mem>>)
      %c2_i32 = arith.constant 2 : i32
      %c248_i32 = arith.constant 248 : i32
      %c0_i32_9 = arith.constant 0 : i32
      %14 = tpu.memref_slice %arg2[%c248_i32, %c0_i32_9] : memref<1024x32xf32, #tpu.memory_space<any>> -> memref<128x32xf32, #tpu.memory_space<any>>
      %c256_i32 = arith.constant 256 : i32
      %c0_i32_10 = arith.constant 0 : i32
      %15 = tpu.memref_slice %arg3[%c256_i32, %c0_i32_10] : memref<1024x32xf32, #tpu.memory_space<any>> -> memref<128x32xf32, #tpu.memory_space<any>>
      %16 = tpu.memref_slice %arg4[%c2_i32] : memref<9x!tpu.dma_semaphore, #tpu.memory_space<semaphore_mem>> -> memref<1x!tpu.dma_semaphore, #tpu.memory_space<semaphore_mem>>
      %17 = tpu.memref_squeeze %16 : memref<1x!tpu.dma_semaphore, #tpu.memory_space<semaphore_mem>> -> memref<!tpu.dma_semaphore, #tpu.memory_space<semaphore_mem>>
      tpu.enqueue_dma source(%14 : memref<128x32xf32, #tpu.memory_space<any>>) target(%15 : memref<128x32xf32, #tpu.memory_space<any>>) target_semaphore(%17 : memref<!tpu.dma_semaphore, #tpu.memory_space<semaphore_mem>>)
      %c3_i32 = arith.constant 3 : i32
      %c376_i32 = arith.constant 376 : i32
      %c0_i32_11 = arith.constant 0 : i32
      %18 = tpu.memref_slice %arg2[%c376_i32, %c0_i32_11] : memref<1024x32xf32, #tpu.memory_space<any>> -> memref<128x32xf32, #tpu.memory_space<any>>
      %c384_i32 = arith.constant 384 : i32
      %c0_i32_12 = arith.constant 0 : i32
      %19 = tpu.memref_slice %arg3[%c384_i32, %c0_i32_12] : memref<1024x32xf32, #tpu.memory_space<any>> -> memref<128x32xf32, #tpu.memory_space<any>>
      %20 = tpu.memref_slice %arg4[%c3_i32] : memref<9x!tpu.dma_semaphore, #tpu.memory_space<semaphore_mem>> -> memref<1x!tpu.dma_semaphore, #tpu.memory_space<semaphore_mem>>
      %21 = tpu.memref_squeeze %20 : memref<1x!tpu.dma_semaphore, #tpu.memory_space<semaphore_mem>> -> memref<!tpu.dma_semaphore, #tpu.memory_space<semaphore_mem>>
      tpu.enqueue_dma source(%18 : memref<128x32xf32, #tpu.memory_space<any>>) target(%19 : memref<128x32xf32, #tpu.memory_space<any>>) target_semaphore(%21 : memref<!tpu.dma_semaphore, #tpu.memory_space<semaphore_mem>>)
      %c8_i32_13 = arith.constant 8 : i32
      %c0_i32_14 = arith.constant 0 : i32
      %c0_i32_15 = arith.constant 0 : i32
      %22 = tpu.memref_slice %arg3[%c0_i32_14, %c0_i32_15] : memref<1024x32xf32, #tpu.memory_space<any>> -> memref<8x32xf32, #tpu.memory_space<any>>
      %23 = tpu.memref_slice %arg4[%c8_i32_13] : memref<9x!tpu.dma_semaphore, #tpu.memory_space<semaphore_mem>> -> memref<1x!tpu.dma_semaphore, #tpu.memory_space<semaphore_mem>>
      %24 = tpu.memref_squeeze %23 : memref<1x!tpu.dma_semaphore, #tpu.memory_space<semaphore_mem>> -> memref<!tpu.dma_semaphore, #tpu.memory_space<semaphore_mem>>
      tpu.enqueue_dma source(%arg1 : memref<8x32xf32, #tpu.memory_space<any>>) target(%22 : memref<8x32xf32, #tpu.memory_space<any>>) target_semaphore(%24 : memref<!tpu.dma_semaphore, #tpu.memory_space<semaphore_mem>>)
      %c0_i32_16 = arith.constant 0 : i32
      %c0_i32_17 = arith.constant 0 : i32
      %c0_i32_18 = arith.constant 0 : i32
      %25 = tpu.memref_slice %arg2[%c0_i32_17, %c0_i32_18] : memref<1024x32xf32, #tpu.memory_space<any>> -> memref<120x32xf32, #tpu.memory_space<any>>
      %c8_i32_19 = arith.constant 8 : i32
      %c0_i32_20 = arith.constant 0 : i32
      %26 = tpu.memref_slice %arg3[%c8_i32_19, %c0_i32_20] : memref<1024x32xf32, #tpu.memory_space<any>> -> memref<120x32xf32, #tpu.memory_space<any>>
      %27 = tpu.memref_slice %arg4[%c0_i32_16] : memref<9x!tpu.dma_semaphore, #tpu.memory_space<semaphore_mem>> -> memref<1x!tpu.dma_semaphore, #tpu.memory_space<semaphore_mem>>
      %28 = tpu.memref_squeeze %27 : memref<1x!tpu.dma_semaphore, #tpu.memory_space<semaphore_mem>> -> memref<!tpu.dma_semaphore, #tpu.memory_space<semaphore_mem>>
      tpu.wait_dma2 semaphore(%28 : memref<!tpu.dma_semaphore, #tpu.memory_space<semaphore_mem>>) src(%25 : memref<120x32xf32, #tpu.memory_space<any>>) dst(%26 : memref<120x32xf32, #tpu.memory_space<any>>)
      %c1_i32_21 = arith.constant 1 : i32
      %c120_i32_22 = arith.constant 120 : i32
      %c0_i32_23 = arith.constant 0 : i32
      %29 = tpu.memref_slice %arg2[%c120_i32_22, %c0_i32_23] : memref<1024x32xf32, #tpu.memory_space<any>> -> memref<128x32xf32, #tpu.memory_space<any>>
      %c128_i32_24 = arith.constant 128 : i32
      %c0_i32_25 = arith.constant 0 : i32
      %30 = tpu.memref_slice %arg3[%c128_i32_24, %c0_i32_25] : memref<1024x32xf32, #tpu.memory_space<any>> -> memref<128x32xf32, #tpu.memory_space<any>>
      %31 = tpu.memref_slice %arg4[%c1_i32_21] : memref<9x!tpu.dma_semaphore, #tpu.memory_space<semaphore_mem>> -> memref<1x!tpu.dma_semaphore, #tpu.memory_space<semaphore_mem>>
      %32 = tpu.memref_squeeze %31 : memref<1x!tpu.dma_semaphore, #tpu.memory_space<semaphore_mem>> -> memref<!tpu.dma_semaphore, #tpu.memory_space<semaphore_mem>>
      tpu.wait_dma2 semaphore(%32 : memref<!tpu.dma_semaphore, #tpu.memory_space<semaphore_mem>>) src(%29 : memref<128x32xf32, #tpu.memory_space<any>>) dst(%30 : memref<128x32xf32, #tpu.memory_space<any>>)
      %c2_i32_26 = arith.constant 2 : i32
      %c248_i32_27 = arith.constant 248 : i32
      %c0_i32_28 = arith.constant 0 : i32
      %33 = tpu.memref_slice %arg2[%c248_i32_27, %c0_i32_28] : memref<1024x32xf32, #tpu.memory_space<any>> -> memref<128x32xf32, #tpu.memory_space<any>>
      %c256_i32_29 = arith.constant 256 : i32
      %c0_i32_30 = arith.constant 0 : i32
      %34 = tpu.memref_slice %arg3[%c256_i32_29, %c0_i32_30] : memref<1024x32xf32, #tpu.memory_space<any>> -> memref<128x32xf32, #tpu.memory_space<any>>
      %35 = tpu.memref_slice %arg4[%c2_i32_26] : memref<9x!tpu.dma_semaphore, #tpu.memory_space<semaphore_mem>> -> memref<1x!tpu.dma_semaphore, #tpu.memory_space<semaphore_mem>>
      %36 = tpu.memref_squeeze %35 : memref<1x!tpu.dma_semaphore, #tpu.memory_space<semaphore_mem>> -> memref<!tpu.dma_semaphore, #tpu.memory_space<semaphore_mem>>
      tpu.wait_dma2 semaphore(%36 : memref<!tpu.dma_semaphore, #tpu.memory_space<semaphore_mem>>) src(%33 : memref<128x32xf32, #tpu.memory_space<any>>) dst(%34 : memref<128x32xf32, #tpu.memory_space<any>>)
      %c3_i32_31 = arith.constant 3 : i32
      %c376_i32_32 = arith.constant 376 : i32
      %c0_i32_33 = arith.constant 0 : i32
      %37 = tpu.memref_slice %arg2[%c376_i32_32, %c0_i32_33] : memref<1024x32xf32, #tpu.memory_space<any>> -> memref<128x32xf32, #tpu.memory_space<any>>
      %c384_i32_34 = arith.constant 384 : i32
      %c0_i32_35 = arith.constant 0 : i32
      %38 = tpu.memref_slice %arg3[%c384_i32_34, %c0_i32_35] : memref<1024x32xf32, #tpu.memory_space<any>> -> memref<128x32xf32, #tpu.memory_space<any>>
      %39 = tpu.memref_slice %arg4[%c3_i32_31] : memref<9x!tpu.dma_semaphore, #tpu.memory_space<semaphore_mem>> -> memref<1x!tpu.dma_semaphore, #tpu.memory_space<semaphore_mem>>
      %40 = tpu.memref_squeeze %39 : memref<1x!tpu.dma_semaphore, #tpu.memory_space<semaphore_mem>> -> memref<!tpu.dma_semaphore, #tpu.memory_space<semaphore_mem>>
      tpu.wait_dma2 semaphore(%40 : memref<!tpu.dma_semaphore, #tpu.memory_space<semaphore_mem>>) src(%37 : memref<128x32xf32, #tpu.memory_space<any>>) dst(%38 : memref<128x32xf32, #tpu.memory_space<any>>)
      %c8_i32_36 = arith.constant 8 : i32
      %c0_i32_37 = arith.constant 0 : i32
      %c0_i32_38 = arith.constant 0 : i32
      %41 = tpu.memref_slice %arg3[%c0_i32_37, %c0_i32_38] : memref<1024x32xf32, #tpu.memory_space<any>> -> memref<8x32xf32, #tpu.memory_space<any>>
      %42 = tpu.memref_slice %arg4[%c8_i32_36] : memref<9x!tpu.dma_semaphore, #tpu.memory_space<semaphore_mem>> -> memref<1x!tpu.dma_semaphore, #tpu.memory_space<semaphore_mem>>
      %43 = tpu.memref_squeeze %42 : memref<1x!tpu.dma_semaphore, #tpu.memory_space<semaphore_mem>> -> memref<!tpu.dma_semaphore, #tpu.memory_space<semaphore_mem>>
      tpu.wait_dma2 semaphore(%43 : memref<!tpu.dma_semaphore, #tpu.memory_space<semaphore_mem>>) src(%arg1 : memref<8x32xf32, #tpu.memory_space<any>>) dst(%41 : memref<8x32xf32, #tpu.memory_space<any>>)
    } else {
    }
    %c1_i32 = arith.constant 1 : i32
    %3 = arith.cmpi eq, %arg0, %c1_i32 : i32
    %4 = arith.extui %3 : i1 to i32
    %c0_i32_1 = arith.constant 0 : i32
    %5 = arith.cmpi ne, %4, %c0_i32_1 : i32
    scf.if %5 {
      %c4_i32 = arith.constant 4 : i32
      %c504_i32 = arith.constant 504 : i32
      %c0_i32_2 = arith.constant 0 : i32
      %6 = tpu.memref_slice %arg2[%c504_i32, %c0_i32_2] : memref<1024x32xf32, #tpu.memory_space<any>> -> memref<128x32xf32, #tpu.memory_space<any>>
      %c512_i32 = arith.constant 512 : i32
      %c0_i32_3 = arith.constant 0 : i32
      %7 = tpu.memref_slice %arg3[%c512_i32, %c0_i32_3] : memref<1024x32xf32, #tpu.memory_space<any>> -> memref<128x32xf32, #tpu.memory_space<any>>
      %8 = tpu.memref_slice %arg4[%c4_i32] : memref<9x!tpu.dma_semaphore, #tpu.memory_space<semaphore_mem>> -> memref<1x!tpu.dma_semaphore, #tpu.memory_space<semaphore_mem>>
      %9 = tpu.memref_squeeze %8 : memref<1x!tpu.dma_semaphore, #tpu.memory_space<semaphore_mem>> -> memref<!tpu.dma_semaphore, #tpu.memory_space<semaphore_mem>>
      tpu.enqueue_dma source(%6 : memref<128x32xf32, #tpu.memory_space<any>>) target(%7 : memref<128x32xf32, #tpu.memory_space<any>>) target_semaphore(%9 : memref<!tpu.dma_semaphore, #tpu.memory_space<semaphore_mem>>)
      %c5_i32 = arith.constant 5 : i32
      %c632_i32 = arith.constant 632 : i32
      %c0_i32_4 = arith.constant 0 : i32
      %10 = tpu.memref_slice %arg2[%c632_i32, %c0_i32_4] : memref<1024x32xf32, #tpu.memory_space<any>> -> memref<128x32xf32, #tpu.memory_space<any>>
      %c640_i32 = arith.constant 640 : i32
      %c0_i32_5 = arith.constant 0 : i32
      %11 = tpu.memref_slice %arg3[%c640_i32, %c0_i32_5] : memref<1024x32xf32, #tpu.memory_space<any>> -> memref<128x32xf32, #tpu.memory_space<any>>
      %12 = tpu.memref_slice %arg4[%c5_i32] : memref<9x!tpu.dma_semaphore, #tpu.memory_space<semaphore_mem>> -> memref<1x!tpu.dma_semaphore, #tpu.memory_space<semaphore_mem>>
      %13 = tpu.memref_squeeze %12 : memref<1x!tpu.dma_semaphore, #tpu.memory_space<semaphore_mem>> -> memref<!tpu.dma_semaphore, #tpu.memory_space<semaphore_mem>>
      tpu.enqueue_dma source(%10 : memref<128x32xf32, #tpu.memory_space<any>>) target(%11 : memref<128x32xf32, #tpu.memory_space<any>>) target_semaphore(%13 : memref<!tpu.dma_semaphore, #tpu.memory_space<semaphore_mem>>)
      %c6_i32 = arith.constant 6 : i32
      %c760_i32 = arith.constant 760 : i32
      %c0_i32_6 = arith.constant 0 : i32
      %14 = tpu.memref_slice %arg2[%c760_i32, %c0_i32_6] : memref<1024x32xf32, #tpu.memory_space<any>> -> memref<128x32xf32, #tpu.memory_space<any>>
      %c768_i32 = arith.constant 768 : i32
      %c0_i32_7 = arith.constant 0 : i32
      %15 = tpu.memref_slice %arg3[%c768_i32, %c0_i32_7] : memref<1024x32xf32, #tpu.memory_space<any>> -> memref<128x32xf32, #tpu.memory_space<any>>
      %16 = tpu.memref_slice %arg4[%c6_i32] : memref<9x!tpu.dma_semaphore, #tpu.memory_space<semaphore_mem>> -> memref<1x!tpu.dma_semaphore, #tpu.memory_space<semaphore_mem>>
      %17 = tpu.memref_squeeze %16 : memref<1x!tpu.dma_semaphore, #tpu.memory_space<semaphore_mem>> -> memref<!tpu.dma_semaphore, #tpu.memory_space<semaphore_mem>>
      tpu.enqueue_dma source(%14 : memref<128x32xf32, #tpu.memory_space<any>>) target(%15 : memref<128x32xf32, #tpu.memory_space<any>>) target_semaphore(%17 : memref<!tpu.dma_semaphore, #tpu.memory_space<semaphore_mem>>)
      %c7_i32 = arith.constant 7 : i32
      %c888_i32 = arith.constant 888 : i32
      %c0_i32_8 = arith.constant 0 : i32
      %18 = tpu.memref_slice %arg2[%c888_i32, %c0_i32_8] : memref<1024x32xf32, #tpu.memory_space<any>> -> memref<128x32xf32, #tpu.memory_space<any>>
      %c896_i32 = arith.constant 896 : i32
      %c0_i32_9 = arith.constant 0 : i32
      %19 = tpu.memref_slice %arg3[%c896_i32, %c0_i32_9] : memref<1024x32xf32, #tpu.memory_space<any>> -> memref<128x32xf32, #tpu.memory_space<any>>
      %20 = tpu.memref_slice %arg4[%c7_i32] : memref<9x!tpu.dma_semaphore, #tpu.memory_space<semaphore_mem>> -> memref<1x!tpu.dma_semaphore, #tpu.memory_space<semaphore_mem>>
      %21 = tpu.memref_squeeze %20 : memref<1x!tpu.dma_semaphore, #tpu.memory_space<semaphore_mem>> -> memref<!tpu.dma_semaphore, #tpu.memory_space<semaphore_mem>>
      tpu.enqueue_dma source(%18 : memref<128x32xf32, #tpu.memory_space<any>>) target(%19 : memref<128x32xf32, #tpu.memory_space<any>>) target_semaphore(%21 : memref<!tpu.dma_semaphore, #tpu.memory_space<semaphore_mem>>)
      %c4_i32_10 = arith.constant 4 : i32
      %c504_i32_11 = arith.constant 504 : i32
      %c0_i32_12 = arith.constant 0 : i32
      %22 = tpu.memref_slice %arg2[%c504_i32_11, %c0_i32_12] : memref<1024x32xf32, #tpu.memory_space<any>> -> memref<128x32xf32, #tpu.memory_space<any>>
      %c512_i32_13 = arith.constant 512 : i32
      %c0_i32_14 = arith.constant 0 : i32
      %23 = tpu.memref_slice %arg3[%c512_i32_13, %c0_i32_14] : memref<1024x32xf32, #tpu.memory_space<any>> -> memref<128x32xf32, #tpu.memory_space<any>>
      %24 = tpu.memref_slice %arg4[%c4_i32_10] : memref<9x!tpu.dma_semaphore, #tpu.memory_space<semaphore_mem>> -> memref<1x!tpu.dma_semaphore, #tpu.memory_space<semaphore_mem>>
      %25 = tpu.memref_squeeze %24 : memref<1x!tpu.dma_semaphore, #tpu.memory_space<semaphore_mem>> -> memref<!tpu.dma_semaphore, #tpu.memory_space<semaphore_mem>>
      tpu.wait_dma2 semaphore(%25 : memref<!tpu.dma_semaphore, #tpu.memory_space<semaphore_mem>>) src(%22 : memref<128x32xf32, #tpu.memory_space<any>>) dst(%23 : memref<128x32xf32, #tpu.memory_space<any>>)
      %c5_i32_15 = arith.constant 5 : i32
      %c632_i32_16 = arith.constant 632 : i32
      %c0_i32_17 = arith.constant 0 : i32
      %26 = tpu.memref_slice %arg2[%c632_i32_16, %c0_i32_17] : memref<1024x32xf32, #tpu.memory_space<any>> -> memref<128x32xf32, #tpu.memory_space<any>>
      %c640_i32_18 = arith.constant 640 : i32
      %c0_i32_19 = arith.constant 0 : i32
      %27 = tpu.memref_slice %arg3[%c640_i32_18, %c0_i32_19] : memref<1024x32xf32, #tpu.memory_space<any>> -> memref<128x32xf32, #tpu.memory_space<any>>
      %28 = tpu.memref_slice %arg4[%c5_i32_15] : memref<9x!tpu.dma_semaphore, #tpu.memory_space<semaphore_mem>> -> memref<1x!tpu.dma_semaphore, #tpu.memory_space<semaphore_mem>>
      %29 = tpu.memref_squeeze %28 : memref<1x!tpu.dma_semaphore, #tpu.memory_space<semaphore_mem>> -> memref<!tpu.dma_semaphore, #tpu.memory_space<semaphore_mem>>
      tpu.wait_dma2 semaphore(%29 : memref<!tpu.dma_semaphore, #tpu.memory_space<semaphore_mem>>) src(%26 : memref<128x32xf32, #tpu.memory_space<any>>) dst(%27 : memref<128x32xf32, #tpu.memory_space<any>>)
      %c6_i32_20 = arith.constant 6 : i32
      %c760_i32_21 = arith.constant 760 : i32
      %c0_i32_22 = arith.constant 0 : i32
      %30 = tpu.memref_slice %arg2[%c760_i32_21, %c0_i32_22] : memref<1024x32xf32, #tpu.memory_space<any>> -> memref<128x32xf32, #tpu.memory_space<any>>
      %c768_i32_23 = arith.constant 768 : i32
      %c0_i32_24 = arith.constant 0 : i32
      %31 = tpu.memref_slice %arg3[%c768_i32_23, %c0_i32_24] : memref<1024x32xf32, #tpu.memory_space<any>> -> memref<128x32xf32, #tpu.memory_space<any>>
      %32 = tpu.memref_slice %arg4[%c6_i32_20] : memref<9x!tpu.dma_semaphore, #tpu.memory_space<semaphore_mem>> -> memref<1x!tpu.dma_semaphore, #tpu.memory_space<semaphore_mem>>
      %33 = tpu.memref_squeeze %32 : memref<1x!tpu.dma_semaphore, #tpu.memory_space<semaphore_mem>> -> memref<!tpu.dma_semaphore, #tpu.memory_space<semaphore_mem>>
      tpu.wait_dma2 semaphore(%33 : memref<!tpu.dma_semaphore, #tpu.memory_space<semaphore_mem>>) src(%30 : memref<128x32xf32, #tpu.memory_space<any>>) dst(%31 : memref<128x32xf32, #tpu.memory_space<any>>)
      %c7_i32_25 = arith.constant 7 : i32
      %c888_i32_26 = arith.constant 888 : i32
      %c0_i32_27 = arith.constant 0 : i32
      %34 = tpu.memref_slice %arg2[%c888_i32_26, %c0_i32_27] : memref<1024x32xf32, #tpu.memory_space<any>> -> memref<128x32xf32, #tpu.memory_space<any>>
      %c896_i32_28 = arith.constant 896 : i32
      %c0_i32_29 = arith.constant 0 : i32
      %35 = tpu.memref_slice %arg3[%c896_i32_28, %c0_i32_29] : memref<1024x32xf32, #tpu.memory_space<any>> -> memref<128x32xf32, #tpu.memory_space<any>>
      %36 = tpu.memref_slice %arg4[%c7_i32_25] : memref<9x!tpu.dma_semaphore, #tpu.memory_space<semaphore_mem>> -> memref<1x!tpu.dma_semaphore, #tpu.memory_space<semaphore_mem>>
      %37 = tpu.memref_squeeze %36 : memref<1x!tpu.dma_semaphore, #tpu.memory_space<semaphore_mem>> -> memref<!tpu.dma_semaphore, #tpu.memory_space<semaphore_mem>>
      tpu.wait_dma2 semaphore(%37 : memref<!tpu.dma_semaphore, #tpu.memory_space<semaphore_mem>>) src(%34 : memref<128x32xf32, #tpu.memory_space<any>>) dst(%35 : memref<128x32xf32, #tpu.memory_space<any>>)
    } else {
    }
    return
  }
}

</mosaic_0001>

<llo_original>
// kernel: memory_bank_fetch.1
$region0: #{memory_bank_fetch.1}
  #allocation0 [shape = 'u32[]', space=smem, size = 0x4, offset = 0x4, fixed_abs, tag = 'smem constant byte address 0x4 - core index']
  #allocation1 [shape = 'u32[72,128]{1,0:T(1,128)}', space=vmem, size = 0x9000, scoped, tag = 'internal scratch']
  #allocation2 [shape = 's32[9]{0}', space=sflag, size = 0x24, scoped, tag = 'scratch operand']
  #allocation3 [shape = 's32[]', space=sflag, size = 0x4, offset = 0, fixed_abs, tag = 'sflag constant byte address 0x0 - dummy sync flag']
  #allocation4 [shape = 's32[]', space=sflag, size = 0x4, offset = 0, fixed_abs, tag = 'sflag constant byte address 0x0 - dummy sync flag']
  #allocation5 [shape = 's32[]', space=sflag, size = 0x4, offset = 0, fixed_abs, tag = 'sflag constant byte address 0x0 - dummy sync flag']
  #allocation6 [shape = 's32[]', space=sflag, size = 0x4, offset = 0, fixed_abs, tag = 'sflag constant byte address 0x0 - dummy sync flag']
  #allocation7 [shape = 's32[]', space=sflag, size = 0x4, offset = 0, fixed_abs, tag = 'sflag constant byte address 0x0 - dummy sync flag']
  #allocation8 [shape = 's32[]', space=sflag, size = 0x4, offset = 0, fixed_abs, tag = 'sflag constant byte address 0x0 - dummy sync flag']
  #allocation9 [shape = 's32[]', space=sflag, size = 0x4, offset = 0, fixed_abs, tag = 'sflag constant byte address 0x0 - dummy sync flag']
  #allocation10 [shape = 's32[]', space=sflag, size = 0x4, offset = 0, fixed_abs, tag = 'sflag constant byte address 0x0 - dummy sync flag']
  #allocation11 [shape = 's32[]', space=sflag, size = 0x4, offset = 0, fixed_abs, tag = 'sflag constant byte address 0x0 - dummy sync flag']
  %s0 = inlined_call_operand.vmem [shape: f32[8,32], index: 0, kind: input, shape index: {}]
  %s1 = inlined_call_operand.vmem [shape: f32[1024,32], index: 1, kind: input, shape index: {}]
  %s2 = inlined_call_operand.vmem [shape: f32[1024,32], index: 2, kind: output, shape index: {}]
  %s3 = sld [smem:[#allocation0]]
  $region203: #{memory_bank_fetch.1} parent=0
    _
  %s5 = ssub.s32 1, %s3
  %s6 = scalar_select 0, %s5, %s3
  loop: start=0, step=1, limit=2
  $region2: #{memory_bank_fetch.1} parent=0 // loop_pre_header
    _
  $region3: #{memory_bank_fetch.1} parent=0 // loop_header
    %s8 = sphi 0, %s12
    %p9 = scmp.ge.s32.totalorder %s8, 2
  $region4: #{memory_bank_fetch.1} parent=0 // loop_header_branch
    %11 = sbr.rel (%p9) target = $region8
  $region5: #{memory_bank_fetch.1} parent=0 // loop_body
    %s13 = sadd.s32 %s8, 1
    %p14 = scmp.eq.s32.totalorder %s8, 0
    // Predicated region
    $region9: #{memory_bank_fetch.1} parent=5 // pred_check
      %p15 = pneg %p14
    $region10: #{memory_bank_fetch.1} parent=5 // pred_check_branch
      %17 = sbr.rel (%p15) target = $region12
    $region11: #{memory_bank_fetch.1} parent=5 // pred_region
      %s18 = scalar_lea.vmem %s2, 8
      // Predicated region
      $region13: #{memory_bank_fetch.1} parent=11 // pred_check
        _
      $region14: #{memory_bank_fetch.1} parent=11 // pred_check_branch
        %20 = sbr.rel (0) target = $region16
      $region15: #{memory_bank_fetch.1} parent=11 // pred_region
        loop: start=0, step=1, limit=1
        $region17: #{memory_bank_fetch.1} parent=15 // loop_pre_header
          _
        $region18: #{memory_bank_fetch.1} parent=15 // loop_header
          %s22 = sphi 0, %s26
          %p23 = scmp.ge.s32.totalorder %s22, 1
          %s27 = sphi %s1, %s1
          %s28 = sphi %s18, %s18
        $region19: #{memory_bank_fetch.1} parent=15 // loop_header_branch
          %25 = sbr.rel (%p23) target = $region23
        $region20: #{memory_bank_fetch.1} parent=15 // loop_body
          %v29 = vld [vmem:[%s27] sm:$0xff]
          %30 = vst [vmem:[%s28] sm:$0xff] %v29
          %v31 = vld [vmem:[%s27 + $0x8] sm:$0xff]
          %32 = vst [vmem:[%s28 + $0x8] sm:$0xff] %v31
          %v33 = vld [vmem:[%s27 + $0x10] sm:$0xff]
          %34 = vst [vmem:[%s28 + $0x10] sm:$0xff] %v33
          %v35 = vld [vmem:[%s27 + $0x18] sm:$0xff]
          %36 = vst [vmem:[%s28 + $0x18] sm:$0xff] %v35
          %v37 = vld [vmem:[%s27 + $0x20] sm:$0xff]
          %38 = vst [vmem:[%s28 + $0x20] sm:$0xff] %v37
          %v39 = vld [vmem:[%s27 + $0x28] sm:$0xff]
          %40 = vst [vmem:[%s28 + $0x28] sm:$0xff] %v39
          %v41 = vld [vmem:[%s27 + $0x30] sm:$0xff]
          %42 = vst [vmem:[%s28 + $0x30] sm:$0xff] %v41
          %v43 = vld [vmem:[%s27 + $0x38] sm:$0xff]
          %44 = vst [vmem:[%s28 + $0x38] sm:$0xff] %v43
          %v45 = vld [vmem:[%s27 + $0x40] sm:$0xff]
          %46 = vst [vmem:[%s28 + $0x40] sm:$0xff] %v45
          %v47 = vld [vmem:[%s27 + $0x48] sm:$0xff]
          %48 = vst [vmem:[%s28 + $0x48] sm:$0xff] %v47
          %v49 = vld [vmem:[%s27 + $0x50] sm:$0xff]
          %50 = vst [vmem:[%s28 + $0x50] sm:$0xff] %v49
          %v51 = vld [vmem:[%s27 + $0x58] sm:$0xff]
          %52 = vst [vmem:[%s28 + $0x58] sm:$0xff] %v51
          %v53 = vld [vmem:[%s27 + $0x60] sm:$0xff]
          %54 = vst [vmem:[%s28 + $0x60] sm:$0xff] %v53
          %v55 = vld [vmem:[%s27 + $0x68] sm:$0xff]
          %56 = vst [vmem:[%s28 + $0x68] sm:$0xff] %v55
          %v57 = vld [vmem:[%s27 + $0x70] sm:$0xff]
          %58 = vst [vmem:[%s28 + $0x70] sm:$0xff] %v57
        $region21: #{memory_bank_fetch.1} parent=15 // loop_footer
          %s26 = sadd.s32 1, %s22
        $region22: #{memory_bank_fetch.1} parent=15 // loop_footer_branch
          %21 = sbr.rel target = $region18
        $region23: #{memory_bank_fetch.1} parent=15 // loop_exit
          _
      $region16: #{memory_bank_fetch.1} parent=11 // pred_fallthru
        _
      // Predicated region
      $region24: #{memory_bank_fetch.1} parent=11 // pred_check
        _
      $region25: #{memory_bank_fetch.1} parent=11 // pred_check_branch
        %60 = sbr.rel target = $region27
      $region26: #{memory_bank_fetch.1} parent=11 // pred_region
        _
      $region27: #{memory_bank_fetch.1} parent=11 // pred_fallthru
        _
      // Predicated region
      $region28: #{memory_bank_fetch.1} parent=11 // pred_check
        _
      $region29: #{memory_bank_fetch.1} parent=11 // pred_check_branch
        %63 = sbr.rel (0) target = $region31
      $region30: #{memory_bank_fetch.1} parent=11 // pred_region
        %64 = vsyncadd [#allocation2], 1920
      $region31: #{memory_bank_fetch.1} parent=11 // pred_fallthru
        _
      %s65 = scalar_lea.vmem %s1, 120
      %s66 = scalar_lea.vmem %s2, 128
      %s67 = scalar_lea.sflag [#allocation2], 1
      // Predicated region
      $region32: #{memory_bank_fetch.1} parent=11 // pred_check
        _
      $region33: #{memory_bank_fetch.1} parent=11 // pred_check_branch
        %69 = sbr.rel (0) target = $region35
      $region34: #{memory_bank_fetch.1} parent=11 // pred_region
        loop: start=0, step=1, limit=1
        $region36: #{memory_bank_fetch.1} parent=34 // loop_pre_header
          _
        $region37: #{memory_bank_fetch.1} parent=34 // loop_header
          %s71 = sphi 0, %s75
          %p72 = scmp.ge.s32.totalorder %s71, 1
          %s76 = sphi %s65, %s65
          %s77 = sphi %s66, %s66
        $region38: #{memory_bank_fetch.1} parent=34 // loop_header_branch
          %74 = sbr.rel (%p72) target = $region42
        $region39: #{memory_bank_fetch.1} parent=34 // loop_body
          %v78 = vld [vmem:[%s76] sm:$0xff]
          %79 = vst [vmem:[%s77] sm:$0xff] %v78
          %v80 = vld [vmem:[%s76 + $0x8] sm:$0xff]
          %81 = vst [vmem:[%s77 + $0x8] sm:$0xff] %v80
          %v82 = vld [vmem:[%s76 + $0x10] sm:$0xff]
          %83 = vst [vmem:[%s77 + $0x10] sm:$0xff] %v82
          %v84 = vld [vmem:[%s76 + $0x18] sm:$0xff]
          %85 = vst [vmem:[%s77 + $0x18] sm:$0xff] %v84
          %v86 = vld [vmem:[%s76 + $0x20] sm:$0xff]
          %87 = vst [vmem:[%s77 + $0x20] sm:$0xff] %v86
          %v88 = vld [vmem:[%s76 + $0x28] sm:$0xff]
          %89 = vst [vmem:[%s77 + $0x28] sm:$0xff] %v88
          %v90 = vld [vmem:[%s76 + $0x30] sm:$0xff]
          %91 = vst [vmem:[%s77 + $0x30] sm:$0xff] %v90
          %v92 = vld [vmem:[%s76 + $0x38] sm:$0xff]
          %93 = vst [vmem:[%s77 + $0x38] sm:$0xff] %v92
          %v94 = vld [vmem:[%s76 + $0x40] sm:$0xff]
          %95 = vst [vmem:[%s77 + $0x40] sm:$0xff] %v94
          %v96 = vld [vmem:[%s76 + $0x48] sm:$0xff]
          %97 = vst [vmem:[%s77 + $0x48] sm:$0xff] %v96
          %v98 = vld [vmem:[%s76 + $0x50] sm:$0xff]
          %99 = vst [vmem:[%s77 + $0x50] sm:$0xff] %v98
          %v100 = vld [vmem:[%s76 + $0x58] sm:$0xff]
          %101 = vst [vmem:[%s77 + $0x58] sm:$0xff] %v100
          %v102 = vld [vmem:[%s76 + $0x60] sm:$0xff]
          %103 = vst [vmem:[%s77 + $0x60] sm:$0xff] %v102
          %v104 = vld [vmem:[%s76 + $0x68] sm:$0xff]
          %105 = vst [vmem:[%s77 + $0x68] sm:$0xff] %v104
          %v106 = vld [vmem:[%s76 + $0x70] sm:$0xff]
          %107 = vst [vmem:[%s77 + $0x70] sm:$0xff] %v106
          %v108 = vld [vmem:[%s76 + $0x78] sm:$0xff]
          %109 = vst [vmem:[%s77 + $0x78] sm:$0xff] %v108
        $region40: #{memory_bank_fetch.1} parent=34 // loop_footer
          %s75 = sadd.s32 1, %s71
        $region41: #{memory_bank_fetch.1} parent=34 // loop_footer_branch
          %70 = sbr.rel target = $region37
        $region42: #{memory_bank_fetch.1} parent=34 // loop_exit
          _
      $region35: #{memory_bank_fetch.1} parent=11 // pred_fallthru
        _
      // Predicated region
      $region43: #{memory_bank_fetch.1} parent=11 // pred_check
        _
      $region44: #{memory_bank_fetch.1} parent=11 // pred_check_branch
        %111 = sbr.rel target = $region46
      $region45: #{memory_bank_fetch.1} parent=11 // pred_region
        _
      $region46: #{memory_bank_fetch.1} parent=11 // pred_fallthru
        _
      // Predicated region
      $region47: #{memory_bank_fetch.1} parent=11 // pred_check
        _
      $region48: #{memory_bank_fetch.1} parent=11 // pred_check_branch
        %114 = sbr.rel (0) target = $region50
      $region49: #{memory_bank_fetch.1} parent=11 // pred_region
        %115 = vsyncadd %s67, 2048
      $region50: #{memory_bank_fetch.1} parent=11 // pred_fallthru
        _
      %s116 = scalar_lea.vmem %s1, 248
      %s117 = scalar_lea.vmem %s2, 256
      %s118 = scalar_lea.sflag [#allocation2], 2
      // Predicated region
      $region51: #{memory_bank_fetch.1} parent=11 // pred_check
        _
      $region52: #{memory_bank_fetch.1} parent=11 // pred_check_branch
        %120 = sbr.rel (0) target = $region54
      $region53: #{memory_bank_fetch.1} parent=11 // pred_region
        loop: start=0, step=1, limit=1
        $region55: #{memory_bank_fetch.1} parent=53 // loop_pre_header
          _
        $region56: #{memory_bank_fetch.1} parent=53 // loop_header
          %s122 = sphi 0, %s126
          %p123 = scmp.ge.s32.totalorder %s122, 1
          %s127 = sphi %s116, %s116
          %s128 = sphi %s117, %s117
        $region57: #{memory_bank_fetch.1} parent=53 // loop_header_branch
          %125 = sbr.rel (%p123) target = $region61
        $region58: #{memory_bank_fetch.1} parent=53 // loop_body
          %v129 = vld [vmem:[%s127] sm:$0xff]
          %130 = vst [vmem:[%s128] sm:$0xff] %v129
          %v131 = vld [vmem:[%s127 + $0x8] sm:$0xff]
          %132 = vst [vmem:[%s128 + $0x8] sm:$0xff] %v131
          %v133 = vld [vmem:[%s127 + $0x10] sm:$0xff]
          %134 = vst [vmem:[%s128 + $0x10] sm:$0xff] %v133
          %v135 = vld [vmem:[%s127 + $0x18] sm:$0xff]
          %136 = vst [vmem:[%s128 + $0x18] sm:$0xff] %v135
          %v137 = vld [vmem:[%s127 + $0x20] sm:$0xff]
          %138 = vst [vmem:[%s128 + $0x20] sm:$0xff] %v137
          %v139 = vld [vmem:[%s127 + $0x28] sm:$0xff]
          %140 = vst [vmem:[%s128 + $0x28] sm:$0xff] %v139
          %v141 = vld [vmem:[%s127 + $0x30] sm:$0xff]
          %142 = vst [vmem:[%s128 + $0x30] sm:$0xff] %v141
          %v143 = vld [vmem:[%s127 + $0x38] sm:$0xff]
          %144 = vst [vmem:[%s128 + $0x38] sm:$0xff] %v143
          %v145 = vld [vmem:[%s127 + $0x40] sm:$0xff]
          %146 = vst [vmem:[%s128 + $0x40] sm:$0xff] %v145
          %v147 = vld [vmem:[%s127 + $0x48] sm:$0xff]
          %148 = vst [vmem:[%s128 + $0x48] sm:$0xff] %v147
          %v149 = vld [vmem:[%s127 + $0x50] sm:$0xff]
          %150 = vst [vmem:[%s128 + $0x50] sm:$0xff] %v149
          %v151 = vld [vmem:[%s127 + $0x58] sm:$0xff]
          %152 = vst [vmem:[%s128 + $0x58] sm:$0xff] %v151
          %v153 = vld [vmem:[%s127 + $0x60] sm:$0xff]
          %154 = vst [vmem:[%s128 + $0x60] sm:$0xff] %v153
          %v155 = vld [vmem:[%s127 + $0x68] sm:$0xff]
          %156 = vst [vmem:[%s128 + $0x68] sm:$0xff] %v155
          %v157 = vld [vmem:[%s127 + $0x70] sm:$0xff]
          %158 = vst [vmem:[%s128 + $0x70] sm:$0xff] %v157
          %v159 = vld [vmem:[%s127 + $0x78] sm:$0xff]
          %160 = vst [vmem:[%s128 + $0x78] sm:$0xff] %v159
        $region59: #{memory_bank_fetch.1} parent=53 // loop_footer
          %s126 = sadd.s32 1, %s122
        $region60: #{memory_bank_fetch.1} parent=53 // loop_footer_branch
          %121 = sbr.rel target = $region56
        $region61: #{memory_bank_fetch.1} parent=53 // loop_exit
          _
      $region54: #{memory_bank_fetch.1} parent=11 // pred_fallthru
        _
      // Predicated region
      $region62: #{memory_bank_fetch.1} parent=11 // pred_check
        _
      $region63: #{memory_bank_fetch.1} parent=11 // pred_check_branch
        %162 = sbr.rel target = $region65
      $region64: #{memory_bank_fetch.1} parent=11 // pred_region
        _
      $region65: #{memory_bank_fetch.1} parent=11 // pred_fallthru
        _
      // Predicated region
      $region66: #{memory_bank_fetch.1} parent=11 // pred_check
        _
      $region67: #{memory_bank_fetch.1} parent=11 // pred_check_branch
        %165 = sbr.rel (0) target = $region69
      $region68: #{memory_bank_fetch.1} parent=11 // pred_region
        %166 = vsyncadd %s118, 2048
      $region69: #{memory_bank_fetch.1} parent=11 // pred_fallthru
        _
      %s167 = scalar_lea.vmem %s1, 376
      %s168 = scalar_lea.vmem %s2, 384
      %s169 = scalar_lea.sflag [#allocation2], 3
      // Predicated region
      $region70: #{memory_bank_fetch.1} parent=11 // pred_check
        _
      $region71: #{memory_bank_fetch.1} parent=11 // pred_check_branch
        %171 = sbr.rel (0) target = $region73
      $region72: #{memory_bank_fetch.1} parent=11 // pred_region
        loop: start=0, step=1, limit=1
        $region74: #{memory_bank_fetch.1} parent=72 // loop_pre_header
          _
        $region75: #{memory_bank_fetch.1} parent=72 // loop_header
          %s173 = sphi 0, %s177
          %p174 = scmp.ge.s32.totalorder %s173, 1
          %s178 = sphi %s167, %s167
          %s179 = sphi %s168, %s168
        $region76: #{memory_bank_fetch.1} parent=72 // loop_header_branch
          %176 = sbr.rel (%p174) target = $region80
        $region77: #{memory_bank_fetch.1} parent=72 // loop_body
          %v180 = vld [vmem:[%s178] sm:$0xff]
          %181 = vst [vmem:[%s179] sm:$0xff] %v180
          %v182 = vld [vmem:[%s178 + $0x8] sm:$0xff]
          %183 = vst [vmem:[%s179 + $0x8] sm:$0xff] %v182
          %v184 = vld [vmem:[%s178 + $0x10] sm:$0xff]
          %185 = vst [vmem:[%s179 + $0x10] sm:$0xff] %v184
          %v186 = vld [vmem:[%s178 + $0x18] sm:$0xff]
          %187 = vst [vmem:[%s179 + $0x18] sm:$0xff] %v186
          %v188 = vld [vmem:[%s178 + $0x20] sm:$0xff]
          %189 = vst [vmem:[%s179 + $0x20] sm:$0xff] %v188
          %v190 = vld [vmem:[%s178 + $0x28] sm:$0xff]
          %191 = vst [vmem:[%s179 + $0x28] sm:$0xff] %v190
          %v192 = vld [vmem:[%s178 + $0x30] sm:$0xff]
          %193 = vst [vmem:[%s179 + $0x30] sm:$0xff] %v192
          %v194 = vld [vmem:[%s178 + $0x38] sm:$0xff]
          %195 = vst [vmem:[%s179 + $0x38] sm:$0xff] %v194
          %v196 = vld [vmem:[%s178 + $0x40] sm:$0xff]
          %197 = vst [vmem:[%s179 + $0x40] sm:$0xff] %v196
          %v198 = vld [vmem:[%s178 + $0x48] sm:$0xff]
          %199 = vst [vmem:[%s179 + $0x48] sm:$0xff] %v198
          %v200 = vld [vmem:[%s178 + $0x50] sm:$0xff]
          %201 = vst [vmem:[%s179 + $0x50] sm:$0xff] %v200
          %v202 = vld [vmem:[%s178 + $0x58] sm:$0xff]
          %203 = vst [vmem:[%s179 + $0x58] sm:$0xff] %v202
          %v204 = vld [vmem:[%s178 + $0x60] sm:$0xff]
          %205 = vst [vmem:[%s179 + $0x60] sm:$0xff] %v204
          %v206 = vld [vmem:[%s178 + $0x68] sm:$0xff]
          %207 = vst [vmem:[%s179 + $0x68] sm:$0xff] %v206
          %v208 = vld [vmem:[%s178 + $0x70] sm:$0xff]
          %209 = vst [vmem:[%s179 + $0x70] sm:$0xff] %v208
          %v210 = vld [vmem:[%s178 + $0x78] sm:$0xff]
          %211 = vst [vmem:[%s179 + $0x78] sm:$0xff] %v210
        $region78: #{memory_bank_fetch.1} parent=72 // loop_footer
          %s177 = sadd.s32 1, %s173
        $region79: #{memory_bank_fetch.1} parent=72 // loop_footer_branch
          %172 = sbr.rel target = $region75
        $region80: #{memory_bank_fetch.1} parent=72 // loop_exit
          _
      $region73: #{memory_bank_fetch.1} parent=11 // pred_fallthru
        _
      // Predicated region
      $region81: #{memory_bank_fetch.1} parent=11 // pred_check
        _
      $region82: #{memory_bank_fetch.1} parent=11 // pred_check_branch
        %213 = sbr.rel target = $region84
      $region83: #{memory_bank_fetch.1} parent=11 // pred_region
        _
      $region84: #{memory_bank_fetch.1} parent=11 // pred_fallthru
        _
      // Predicated region
      $region85: #{memory_bank_fetch.1} parent=11 // pred_check
        _
      $region86: #{memory_bank_fetch.1} parent=11 // pred_check_branch
        %216 = sbr.rel (0) target = $region88
      $region87: #{memory_bank_fetch.1} parent=11 // pred_region
        %217 = vsyncadd %s169, 2048
      $region88: #{memory_bank_fetch.1} parent=11 // pred_fallthru
        _
      %s218 = scalar_lea.sflag [#allocation2], 8
      // Predicated region
      $region89: #{memory_bank_fetch.1} parent=11 // pred_check
        _
      $region90: #{memory_bank_fetch.1} parent=11 // pred_check_branch
        %220 = sbr.rel (0) target = $region92
      $region91: #{memory_bank_fetch.1} parent=11 // pred_region
        // Predicated region
        $region104: #{memory_bank_fetch.1} parent=91 // pred_check
          _
        $region105: #{memory_bank_fetch.1} parent=91 // pred_check_branch
          %236 = sbr.rel (0) target = $region107
        $region106: #{memory_bank_fetch.1} parent=91 // pred_region
          loop: start=0, step=1, limit=1
          $region108: #{memory_bank_fetch.1} parent=106 // loop_pre_header
            _
          $region109: #{memory_bank_fetch.1} parent=106 // loop_header
            %s238 = sphi 0, %s242
            %p239 = scmp.ge.s32.totalorder %s238, 1
            %s243 = sphi %s0, %s0
            %s244 = sphi %s2, %s2
          $region110: #{memory_bank_fetch.1} parent=106 // loop_header_branch
            %241 = sbr.rel (%p239) target = $region114
          $region111: #{memory_bank_fetch.1} parent=106 // loop_body
            %v245 = vld [vmem:[%s243] sm:$0xff]
            %246 = vst [vmem:[%s244] sm:$0xff] %v245
          $region112: #{memory_bank_fetch.1} parent=106 // loop_footer
            %s242 = sadd.s32 1, %s238
          $region113: #{memory_bank_fetch.1} parent=106 // loop_footer_branch
            %237 = sbr.rel target = $region109
          $region114: #{memory_bank_fetch.1} parent=106 // loop_exit
            _
        $region107: #{memory_bank_fetch.1} parent=91 // pred_fallthru
          _
        // Predicated region
        $region115: #{memory_bank_fetch.1} parent=91 // pred_check
          _
        $region116: #{memory_bank_fetch.1} parent=91 // pred_check_branch
          %248 = sbr.rel target = $region118
        $region117: #{memory_bank_fetch.1} parent=91 // pred_region
          _
        $region118: #{memory_bank_fetch.1} parent=91 // pred_fallthru
          _
      $region92: #{memory_bank_fetch.1} parent=11 // pred_fallthru
        _
      // Predicated region
      $region93: #{memory_bank_fetch.1} parent=11 // pred_check
        _
      $region94: #{memory_bank_fetch.1} parent=11 // pred_check_branch
        %222 = sbr.rel target = $region96
      $region95: #{memory_bank_fetch.1} parent=11 // pred_region
        %s224 = ssub.s32 256, 1
        loop: start=0, step=1, limit=1
        $region97: #{memory_bank_fetch.1} parent=95 // loop_pre_header
          _
        $region98: #{memory_bank_fetch.1} parent=95 // loop_header
          %s226 = sphi 0, %s230
          %p227 = scmp.ge.s32.totalorder %s226, 1
          %s231 = sphi %s0, %s0
          %s232 = sphi %s2, %s2
        $region99: #{memory_bank_fetch.1} parent=95 // loop_header_branch
          %229 = sbr.rel (%p227) target = $region103
        $region100: #{memory_bank_fetch.1} parent=95 // loop_body
          %v233 = vld [vmem:[%s231] sm:%s224]
          %234 = vst [vmem:[%s232] sm:%s224] %v233
        $region101: #{memory_bank_fetch.1} parent=95 // loop_footer
          %s230 = sadd.s32 1, %s226
        $region102: #{memory_bank_fetch.1} parent=95 // loop_footer_branch
          %225 = sbr.rel target = $region98
        $region103: #{memory_bank_fetch.1} parent=95 // loop_exit
          _
      $region96: #{memory_bank_fetch.1} parent=11 // pred_fallthru
        _
      // Predicated region
      $region119: #{memory_bank_fetch.1} parent=11 // pred_check
        _
      $region120: #{memory_bank_fetch.1} parent=11 // pred_check_branch
        %251 = sbr.rel (0) target = $region122
      $region121: #{memory_bank_fetch.1} parent=11 // pred_region
        %252 = vsyncadd %s218, 128
      $region122: #{memory_bank_fetch.1} parent=11 // pred_fallthru
        _
      %s253 = smul.u32 120, 1
      %s254 = sshll.u32 %s253, 4
      %255 = dma.done [#allocation2], %s254
      %s256 = smul.u32 128, 1
      %s257 = sshll.u32 %s256, 4
      %258 = dma.done %s67, %s257
      %s259 = sshll.u32 %s256, 4
      %260 = dma.done %s118, %s259
      %s261 = sshll.u32 %s256, 4
      %262 = dma.done %s169, %s261
      %s263 = smul.u32 8, 1
      %s264 = sshll.u32 %s263, 4
      %265 = dma.done %s218, %s264
    $region12: #{memory_bank_fetch.1} parent=5 // pred_fallthru
      _
    %p266 = scmp.eq.s32.totalorder %s8, 1
    // Predicated region
    $region123: #{memory_bank_fetch.1} parent=5 // pred_check
      %p267 = pneg %p266
    $region124: #{memory_bank_fetch.1} parent=5 // pred_check_branch
      %269 = sbr.rel (%p267) target = $region126
    $region125: #{memory_bank_fetch.1} parent=5 // pred_region
      %s270 = scalar_lea.vmem %s1, 504
      %s271 = scalar_lea.vmem %s2, 512
      %s272 = scalar_lea.sflag [#allocation2], 4
      // Predicated region
      $region127: #{memory_bank_fetch.1} parent=125 // pred_check
        _
      $region128: #{memory_bank_fetch.1} parent=125 // pred_check_branch
        %274 = sbr.rel (0) target = $region130
      $region129: #{memory_bank_fetch.1} parent=125 // pred_region
        loop: start=0, step=1, limit=1
        $region131: #{memory_bank_fetch.1} parent=129 // loop_pre_header
          _
        $region132: #{memory_bank_fetch.1} parent=129 // loop_header
          %s276 = sphi 0, %s280
          %p277 = scmp.ge.s32.totalorder %s276, 1
          %s281 = sphi %s270, %s270
          %s282 = sphi %s271, %s271
        $region133: #{memory_bank_fetch.1} parent=129 // loop_header_branch
          %279 = sbr.rel (%p277) target = $region137
        $region134: #{memory_bank_fetch.1} parent=129 // loop_body
          %v283 = vld [vmem:[%s281] sm:$0xff]
          %284 = vst [vmem:[%s282] sm:$0xff] %v283
          %v285 = vld [vmem:[%s281 + $0x8] sm:$0xff]
          %286 = vst [vmem:[%s282 + $0x8] sm:$0xff] %v285
          %v287 = vld [vmem:[%s281 + $0x10] sm:$0xff]
          %288 = vst [vmem:[%s282 + $0x10] sm:$0xff] %v287
          %v289 = vld [vmem:[%s281 + $0x18] sm:$0xff]
          %290 = vst [vmem:[%s282 + $0x18] sm:$0xff] %v289
          %v291 = vld [vmem:[%s281 + $0x20] sm:$0xff]
          %292 = vst [vmem:[%s282 + $0x20] sm:$0xff] %v291
          %v293 = vld [vmem:[%s281 + $0x28] sm:$0xff]
          %294 = vst [vmem:[%s282 + $0x28] sm:$0xff] %v293
          %v295 = vld [vmem:[%s281 + $0x30] sm:$0xff]
          %296 = vst [vmem:[%s282 + $0x30] sm:$0xff] %v295
          %v297 = vld [vmem:[%s281 + $0x38] sm:$0xff]
          %298 = vst [vmem:[%s282 + $0x38] sm:$0xff] %v297
          %v299 = vld [vmem:[%s281 + $0x40] sm:$0xff]
          %300 = vst [vmem:[%s282 + $0x40] sm:$0xff] %v299
          %v301 = vld [vmem:[%s281 + $0x48] sm:$0xff]
          %302 = vst [vmem:[%s282 + $0x48] sm:$0xff] %v301
          %v303 = vld [vmem:[%s281 + $0x50] sm:$0xff]
          %304 = vst [vmem:[%s282 + $0x50] sm:$0xff] %v303
          %v305 = vld [vmem:[%s281 + $0x58] sm:$0xff]
          %306 = vst [vmem:[%s282 + $0x58] sm:$0xff] %v305
          %v307 = vld [vmem:[%s281 + $0x60] sm:$0xff]
          %308 = vst [vmem:[%s282 + $0x60] sm:$0xff] %v307
          %v309 = vld [vmem:[%s281 + $0x68] sm:$0xff]
          %310 = vst [vmem:[%s282 + $0x68] sm:$0xff] %v309
          %v311 = vld [vmem:[%s281 + $0x70] sm:$0xff]
          %312 = vst [vmem:[%s282 + $0x70] sm:$0xff] %v311
          %v313 = vld [vmem:[%s281 + $0x78] sm:$0xff]
          %314 = vst [vmem:[%s282 + $0x78] sm:$0xff] %v313
        $region135: #{memory_bank_fetch.1} parent=129 // loop_footer
          %s280 = sadd.s32 1, %s276
        $region136: #{memory_bank_fetch.1} parent=129 // loop_footer_branch
          %275 = sbr.rel target = $region132
        $region137: #{memory_bank_fetch.1} parent=129 // loop_exit
          _
      $region130: #{memory_bank_fetch.1} parent=125 // pred_fallthru
        _
      // Predicated region
      $region138: #{memory_bank_fetch.1} parent=125 // pred_check
        _
      $region139: #{memory_bank_fetch.1} parent=125 // pred_check_branch
        %316 = sbr.rel target = $region141
      $region140: #{memory_bank_fetch.1} parent=125 // pred_region
        _
      $region141: #{memory_bank_fetch.1} parent=125 // pred_fallthru
        _
      // Predicated region
      $region142: #{memory_bank_fetch.1} parent=125 // pred_check
        _
      $region143: #{memory_bank_fetch.1} parent=125 // pred_check_branch
        %319 = sbr.rel (0) target = $region145
      $region144: #{memory_bank_fetch.1} parent=125 // pred_region
        %320 = vsyncadd %s272, 2048
      $region145: #{memory_bank_fetch.1} parent=125 // pred_fallthru
        _
      %s321 = scalar_lea.vmem %s1, 632
      %s322 = scalar_lea.vmem %s2, 640
      %s323 = scalar_lea.sflag [#allocation2], 5
      // Predicated region
      $region146: #{memory_bank_fetch.1} parent=125 // pred_check
        _
      $region147: #{memory_bank_fetch.1} parent=125 // pred_check_branch
        %325 = sbr.rel (0) target = $region149
      $region148: #{memory_bank_fetch.1} parent=125 // pred_region
        loop: start=0, step=1, limit=1
        $region150: #{memory_bank_fetch.1} parent=148 // loop_pre_header
          _
        $region151: #{memory_bank_fetch.1} parent=148 // loop_header
          %s327 = sphi 0, %s331
          %p328 = scmp.ge.s32.totalorder %s327, 1
          %s332 = sphi %s321, %s321
          %s333 = sphi %s322, %s322
        $region152: #{memory_bank_fetch.1} parent=148 // loop_header_branch
          %330 = sbr.rel (%p328) target = $region156
        $region153: #{memory_bank_fetch.1} parent=148 // loop_body
          %v334 = vld [vmem:[%s332] sm:$0xff]
          %335 = vst [vmem:[%s333] sm:$0xff] %v334
          %v336 = vld [vmem:[%s332 + $0x8] sm:$0xff]
          %337 = vst [vmem:[%s333 + $0x8] sm:$0xff] %v336
          %v338 = vld [vmem:[%s332 + $0x10] sm:$0xff]
          %339 = vst [vmem:[%s333 + $0x10] sm:$0xff] %v338
          %v340 = vld [vmem:[%s332 + $0x18] sm:$0xff]
          %341 = vst [vmem:[%s333 + $0x18] sm:$0xff] %v340
          %v342 = vld [vmem:[%s332 + $0x20] sm:$0xff]
          %343 = vst [vmem:[%s333 + $0x20] sm:$0xff] %v342
          %v344 = vld [vmem:[%s332 + $0x28] sm:$0xff]
          %345 = vst [vmem:[%s333 + $0x28] sm:$0xff] %v344
          %v346 = vld [vmem:[%s332 + $0x30] sm:$0xff]
          %347 = vst [vmem:[%s333 + $0x30] sm:$0xff] %v346
          %v348 = vld [vmem:[%s332 + $0x38] sm:$0xff]
          %349 = vst [vmem:[%s333 + $0x38] sm:$0xff] %v348
          %v350 = vld [vmem:[%s332 + $0x40] sm:$0xff]
          %351 = vst [vmem:[%s333 + $0x40] sm:$0xff] %v350
          %v352 = vld [vmem:[%s332 + $0x48] sm:$0xff]
          %353 = vst [vmem:[%s333 + $0x48] sm:$0xff] %v352
          %v354 = vld [vmem:[%s332 + $0x50] sm:$0xff]
          %355 = vst [vmem:[%s333 + $0x50] sm:$0xff] %v354
          %v356 = vld [vmem:[%s332 + $0x58] sm:$0xff]
          %357 = vst [vmem:[%s333 + $0x58] sm:$0xff] %v356
          %v358 = vld [vmem:[%s332 + $0x60] sm:$0xff]
          %359 = vst [vmem:[%s333 + $0x60] sm:$0xff] %v358
          %v360 = vld [vmem:[%s332 + $0x68] sm:$0xff]
          %361 = vst [vmem:[%s333 + $0x68] sm:$0xff] %v360
          %v362 = vld [vmem:[%s332 + $0x70] sm:$0xff]
          %363 = vst [vmem:[%s333 + $0x70] sm:$0xff] %v362
          %v364 = vld [vmem:[%s332 + $0x78] sm:$0xff]
          %365 = vst [vmem:[%s333 + $0x78] sm:$0xff] %v364
        $region154: #{memory_bank_fetch.1} parent=148 // loop_footer
          %s331 = sadd.s32 1, %s327
        $region155: #{memory_bank_fetch.1} parent=148 // loop_footer_branch
          %326 = sbr.rel target = $region151
        $region156: #{memory_bank_fetch.1} parent=148 // loop_exit
          _
      $region149: #{memory_bank_fetch.1} parent=125 // pred_fallthru
        _
      // Predicated region
      $region157: #{memory_bank_fetch.1} parent=125 // pred_check
        _
      $region158: #{memory_bank_fetch.1} parent=125 // pred_check_branch
        %367 = sbr.rel target = $region160
      $region159: #{memory_bank_fetch.1} parent=125 // pred_region
        _
      $region160: #{memory_bank_fetch.1} parent=125 // pred_fallthru
        _
      // Predicated region
      $region161: #{memory_bank_fetch.1} parent=125 // pred_check
        _
      $region162: #{memory_bank_fetch.1} parent=125 // pred_check_branch
        %370 = sbr.rel (0) target = $region164
      $region163: #{memory_bank_fetch.1} parent=125 // pred_region
        %371 = vsyncadd %s323, 2048
      $region164: #{memory_bank_fetch.1} parent=125 // pred_fallthru
        _
      %s372 = scalar_lea.vmem %s1, 760
      %s373 = scalar_lea.vmem %s2, 768
      %s374 = scalar_lea.sflag [#allocation2], 6
      // Predicated region
      $region165: #{memory_bank_fetch.1} parent=125 // pred_check
        _
      $region166: #{memory_bank_fetch.1} parent=125 // pred_check_branch
        %376 = sbr.rel (0) target = $region168
      $region167: #{memory_bank_fetch.1} parent=125 // pred_region
        loop: start=0, step=1, limit=1
        $region169: #{memory_bank_fetch.1} parent=167 // loop_pre_header
          _
        $region170: #{memory_bank_fetch.1} parent=167 // loop_header
          %s378 = sphi 0, %s382
          %p379 = scmp.ge.s32.totalorder %s378, 1
          %s383 = sphi %s372, %s372
          %s384 = sphi %s373, %s373
        $region171: #{memory_bank_fetch.1} parent=167 // loop_header_branch
          %381 = sbr.rel (%p379) target = $region175
        $region172: #{memory_bank_fetch.1} parent=167 // loop_body
          %v385 = vld [vmem:[%s383] sm:$0xff]
          %386 = vst [vmem:[%s384] sm:$0xff] %v385
          %v387 = vld [vmem:[%s383 + $0x8] sm:$0xff]
          %388 = vst [vmem:[%s384 + $0x8] sm:$0xff] %v387
          %v389 = vld [vmem:[%s383 + $0x10] sm:$0xff]
          %390 = vst [vmem:[%s384 + $0x10] sm:$0xff] %v389
          %v391 = vld [vmem:[%s383 + $0x18] sm:$0xff]
          %392 = vst [vmem:[%s384 + $0x18] sm:$0xff] %v391
          %v393 = vld [vmem:[%s383 + $0x20] sm:$0xff]
          %394 = vst [vmem:[%s384 + $0x20] sm:$0xff] %v393
          %v395 = vld [vmem:[%s383 + $0x28] sm:$0xff]
          %396 = vst [vmem:[%s384 + $0x28] sm:$0xff] %v395
          %v397 = vld [vmem:[%s383 + $0x30] sm:$0xff]
          %398 = vst [vmem:[%s384 + $0x30] sm:$0xff] %v397
          %v399 = vld [vmem:[%s383 + $0x38] sm:$0xff]
          %400 = vst [vmem:[%s384 + $0x38] sm:$0xff] %v399
          %v401 = vld [vmem:[%s383 + $0x40] sm:$0xff]
          %402 = vst [vmem:[%s384 + $0x40] sm:$0xff] %v401
          %v403 = vld [vmem:[%s383 + $0x48] sm:$0xff]
          %404 = vst [vmem:[%s384 + $0x48] sm:$0xff] %v403
          %v405 = vld [vmem:[%s383 + $0x50] sm:$0xff]
          %406 = vst [vmem:[%s384 + $0x50] sm:$0xff] %v405
          %v407 = vld [vmem:[%s383 + $0x58] sm:$0xff]
          %408 = vst [vmem:[%s384 + $0x58] sm:$0xff] %v407
          %v409 = vld [vmem:[%s383 + $0x60] sm:$0xff]
          %410 = vst [vmem:[%s384 + $0x60] sm:$0xff] %v409
          %v411 = vld [vmem:[%s383 + $0x68] sm:$0xff]
          %412 = vst [vmem:[%s384 + $0x68] sm:$0xff] %v411
          %v413 = vld [vmem:[%s383 + $0x70] sm:$0xff]
          %414 = vst [vmem:[%s384 + $0x70] sm:$0xff] %v413
          %v415 = vld [vmem:[%s383 + $0x78] sm:$0xff]
          %416 = vst [vmem:[%s384 + $0x78] sm:$0xff] %v415
        $region173: #{memory_bank_fetch.1} parent=167 // loop_footer
          %s382 = sadd.s32 1, %s378
        $region174: #{memory_bank_fetch.1} parent=167 // loop_footer_branch
          %377 = sbr.rel target = $region170
        $region175: #{memory_bank_fetch.1} parent=167 // loop_exit
          _
      $region168: #{memory_bank_fetch.1} parent=125 // pred_fallthru
        _
      // Predicated region
      $region176: #{memory_bank_fetch.1} parent=125 // pred_check
        _
      $region177: #{memory_bank_fetch.1} parent=125 // pred_check_branch
        %418 = sbr.rel target = $region179
      $region178: #{memory_bank_fetch.1} parent=125 // pred_region
        _
      $region179: #{memory_bank_fetch.1} parent=125 // pred_fallthru
        _
      // Predicated region
      $region180: #{memory_bank_fetch.1} parent=125 // pred_check
        _
      $region181: #{memory_bank_fetch.1} parent=125 // pred_check_branch
        %421 = sbr.rel (0) target = $region183
      $region182: #{memory_bank_fetch.1} parent=125 // pred_region
        %422 = vsyncadd %s374, 2048
      $region183: #{memory_bank_fetch.1} parent=125 // pred_fallthru
        _
      %s423 = scalar_lea.vmem %s1, 888
      %s424 = scalar_lea.vmem %s2, 896
      %s425 = scalar_lea.sflag [#allocation2], 7
      // Predicated region
      $region184: #{memory_bank_fetch.1} parent=125 // pred_check
        _
      $region185: #{memory_bank_fetch.1} parent=125 // pred_check_branch
        %427 = sbr.rel (0) target = $region187
      $region186: #{memory_bank_fetch.1} parent=125 // pred_region
        loop: start=0, step=1, limit=1
        $region188: #{memory_bank_fetch.1} parent=186 // loop_pre_header
          _
        $region189: #{memory_bank_fetch.1} parent=186 // loop_header
          %s429 = sphi 0, %s433
          %p430 = scmp.ge.s32.totalorder %s429, 1
          %s434 = sphi %s423, %s423
          %s435 = sphi %s424, %s424
        $region190: #{memory_bank_fetch.1} parent=186 // loop_header_branch
          %432 = sbr.rel (%p430) target = $region194
        $region191: #{memory_bank_fetch.1} parent=186 // loop_body
          %v436 = vld [vmem:[%s434] sm:$0xff]
          %437 = vst [vmem:[%s435] sm:$0xff] %v436
          %v438 = vld [vmem:[%s434 + $0x8] sm:$0xff]
          %439 = vst [vmem:[%s435 + $0x8] sm:$0xff] %v438
          %v440 = vld [vmem:[%s434 + $0x10] sm:$0xff]
          %441 = vst [vmem:[%s435 + $0x10] sm:$0xff] %v440
          %v442 = vld [vmem:[%s434 + $0x18] sm:$0xff]
          %443 = vst [vmem:[%s435 + $0x18] sm:$0xff] %v442
          %v444 = vld [vmem:[%s434 + $0x20] sm:$0xff]
          %445 = vst [vmem:[%s435 + $0x20] sm:$0xff] %v444
          %v446 = vld [vmem:[%s434 + $0x28] sm:$0xff]
          %447 = vst [vmem:[%s435 + $0x28] sm:$0xff] %v446
          %v448 = vld [vmem:[%s434 + $0x30] sm:$0xff]
          %449 = vst [vmem:[%s435 + $0x30] sm:$0xff] %v448
          %v450 = vld [vmem:[%s434 + $0x38] sm:$0xff]
          %451 = vst [vmem:[%s435 + $0x38] sm:$0xff] %v450
          %v452 = vld [vmem:[%s434 + $0x40] sm:$0xff]
          %453 = vst [vmem:[%s435 + $0x40] sm:$0xff] %v452
          %v454 = vld [vmem:[%s434 + $0x48] sm:$0xff]
          %455 = vst [vmem:[%s435 + $0x48] sm:$0xff] %v454
          %v456 = vld [vmem:[%s434 + $0x50] sm:$0xff]
          %457 = vst [vmem:[%s435 + $0x50] sm:$0xff] %v456
          %v458 = vld [vmem:[%s434 + $0x58] sm:$0xff]
          %459 = vst [vmem:[%s435 + $0x58] sm:$0xff] %v458
          %v460 = vld [vmem:[%s434 + $0x60] sm:$0xff]
          %461 = vst [vmem:[%s435 + $0x60] sm:$0xff] %v460
          %v462 = vld [vmem:[%s434 + $0x68] sm:$0xff]
          %463 = vst [vmem:[%s435 + $0x68] sm:$0xff] %v462
          %v464 = vld [vmem:[%s434 + $0x70] sm:$0xff]
          %465 = vst [vmem:[%s435 + $0x70] sm:$0xff] %v464
          %v466 = vld [vmem:[%s434 + $0x78] sm:$0xff]
          %467 = vst [vmem:[%s435 + $0x78] sm:$0xff] %v466
        $region192: #{memory_bank_fetch.1} parent=186 // loop_footer
          %s433 = sadd.s32 1, %s429
        $region193: #{memory_bank_fetch.1} parent=186 // loop_footer_branch
          %428 = sbr.rel target = $region189
        $region194: #{memory_bank_fetch.1} parent=186 // loop_exit
          _
      $region187: #{memory_bank_fetch.1} parent=125 // pred_fallthru
        _
      // Predicated region
      $region195: #{memory_bank_fetch.1} parent=125 // pred_check
        _
      $region196: #{memory_bank_fetch.1} parent=125 // pred_check_branch
        %469 = sbr.rel target = $region198
      $region197: #{memory_bank_fetch.1} parent=125 // pred_region
        _
      $region198: #{memory_bank_fetch.1} parent=125 // pred_fallthru
        _
      // Predicated region
      $region199: #{memory_bank_fetch.1} parent=125 // pred_check
        _
      $region200: #{memory_bank_fetch.1} parent=125 // pred_check_branch
        %472 = sbr.rel (0) target = $region202
      $region201: #{memory_bank_fetch.1} parent=125 // pred_region
        %473 = vsyncadd %s425, 2048
      $region202: #{memory_bank_fetch.1} parent=125 // pred_fallthru
        _
      %s474 = smul.u32 128, 1
      %s475 = sshll.u32 %s474, 4
      %476 = dma.done %s272, %s475
      %s477 = sshll.u32 %s474, 4
      %478 = dma.done %s323, %s477
      %s479 = sshll.u32 %s474, 4
      %480 = dma.done %s374, %s479
      %s481 = sshll.u32 %s474, 4
      %482 = dma.done %s425, %s481
    $region126: #{memory_bank_fetch.1} parent=5 // pred_fallthru
      _
  $region6: #{memory_bank_fetch.1} parent=0 // loop_footer
    %s12 = sadd.s32 1, %s8
  $region7: #{memory_bank_fetch.1} parent=0 // loop_footer_branch
    %7 = sbr.rel target = $region3
  $region8: #{memory_bank_fetch.1} parent=0 // loop_exit
    _
  %483 = vsyncmov [#allocation2]
  %s484 = vpop.sfrf %483
  %p485 = scmp.eq.s32.totalorder %s484, 0
  %p486 = pneg %p485
  %488 = shalt.err (%p486)
  %s489 = scalar_lea.sflag [#allocation2], 1
  %490 = vsyncmov %s489
  %s491 = vpop.sfrf %490
  %p492 = scmp.eq.s32.totalorder %s491, 0
  %p493 = pneg %p492
  %495 = shalt.err (%p493)
  %s496 = scalar_lea.sflag [#allocation2], 2
  %497 = vsyncmov %s496
  %s498 = vpop.sfrf %497
  %p499 = scmp.eq.s32.totalorder %s498, 0
  %p500 = pneg %p499
  %502 = shalt.err (%p500)
  %s503 = scalar_lea.sflag [#allocation2], 3
  %504 = vsyncmov %s503
  %s505 = vpop.sfrf %504
  %p506 = scmp.eq.s32.totalorder %s505, 0
  %p507 = pneg %p506
  %509 = shalt.err (%p507)
  %s510 = scalar_lea.sflag [#allocation2], 4
  %511 = vsyncmov %s510
  %s512 = vpop.sfrf %511
  %p513 = scmp.eq.s32.totalorder %s512, 0
  %p514 = pneg %p513
  %516 = shalt.err (%p514)
  %s517 = scalar_lea.sflag [#allocation2], 5
  %518 = vsyncmov %s517
  %s519 = vpop.sfrf %518
  %p520 = scmp.eq.s32.totalorder %s519, 0
  %p521 = pneg %p520
  %523 = shalt.err (%p521)
  %s524 = scalar_lea.sflag [#allocation2], 6
  %525 = vsyncmov %s524
  %s526 = vpop.sfrf %525
  %p527 = scmp.eq.s32.totalorder %s526, 0
  %p528 = pneg %p527
  %530 = shalt.err (%p528)
  %s531 = scalar_lea.sflag [#allocation2], 7
  %532 = vsyncmov %s531
  %s533 = vpop.sfrf %532
  %p534 = scmp.eq.s32.totalorder %s533, 0
  %p535 = pneg %p534
  %537 = shalt.err (%p535)
  %s538 = scalar_lea.sflag [#allocation2], 8
  %539 = vsyncmov %s538
  %s540 = vpop.sfrf %539
  %p541 = scmp.eq.s32.totalorder %s540, 0
  %p542 = pneg %p541
  %544 = shalt.err (%p542)

</llo_original>
